<compile_context>
chip_gen: v5e
topology: v5e:2x2
jax: 0.10.0
libtpu: 0.0.40
codegen_flags: <defaults>
</compile_context>

<pallas_src>
import math

import jax
import jax.numpy as jnp
from jax.experimental import pallas as pl
from jax.experimental.pallas import tpu as pltpu


def _build_pe_table(d_model: int, max_len: int) -> jnp.ndarray:
    """Sinusoidal positional-encoding table, shape (1, max_len, d_model), f32."""
    position = jnp.arange(0, max_len, dtype=jnp.float32)[:, None]             # (max_len, 1)
    div_term = jnp.exp(
        jnp.arange(0, d_model, 2, dtype=jnp.float32) * (-math.log(10000.0) / d_model)
    )                                                                          # (d_model//2,)
    angles = position * div_term                                               # (max_len, d//2)
    pe = jnp.zeros((max_len, d_model), dtype=jnp.float32)
    pe = pe.at[:, 0::2].set(jnp.sin(angles))
    pe = pe.at[:, 1::2].set(jnp.cos(angles))
    return pe[None, :, :]                                                      # (1, max_len, d)


def _pe_add_kernel(x_ref, pe_ref, o_ref):
    # x_ref:  (block_b, block_l) tile of flattened (B, S*D) input, x.dtype
    # pe_ref: (1, block_l) f32 tile of the flattened pe row (broadcast over rows)
    # Add in f32 (parity with the PyTorch f32 buffer); cast at the store.
    # Eval-mode dropout is identity.
    o_ref[...] = (x_ref[...].astype(jnp.float32) + pe_ref[...]).astype(o_ref.dtype)


def _ceil_div(a: int, b: int) -> int:
    return -(-a // b)


def _round_up(a: int, m: int) -> int:
    return _ceil_div(a, m) * m


def _choose_tiles(B: int, L: int, itemsize: int):
    """Byte-targeted, layout-legal tiles for the flattened (B, L) add.

    Every block dim is either the full array extent (always legal) or
    128-lane / sublane aligned; the cdiv grid masks the boundary tile.
    """
    target_bytes = 4 << 20                      # ~4 MiB of x per tile
    row_cap = 1024                              # multiple of 8/16/32 -> legal for all dtypes

    # Rows: whole batch up to the cap (full-extent dim is always layout-legal).
    block_b = B if B <= row_cap else row_cap

    # Lanes: sized so block_b * block_l * itemsize ~= target_bytes.
    want_l = max(128, target_bytes // max(1, block_b * itemsize))
    if want_l >= L:
        block_l = L                             # full-extent lanes
    else:
        block_l = (want_l // 128) * 128         # lane-aligned tile

    n_row = _ceil_div(B, block_b)
    n_lane = _ceil_div(L, block_l)

    # If everything collapsed to a single block but the tensor is big enough to
    # matter, split the lane axis so v7x's second TensorCore gets work.
    if n_row == 1 and n_lane == 1 and B * L * itemsize > (2 << 20):
        half = _round_up(_ceil_div(L, 2), 128)
        if half < L:
            block_l = half
            n_lane = _ceil_div(L, block_l)

    return block_b, block_l, n_row, n_lane


def positional_encoding_forward(x: jnp.ndarray, pe: jnp.ndarray,
                                *, donate_x: bool = False) -> jnp.ndarray:
    """x: (B, S, D);  pe: (1, max_len, D) float32.  Returns (B, S, D) in x.dtype."""
    B, S, D = x.shape
    max_len = pe.shape[1]
    assert S <= max_len, f"sequence length {S} exceeds pe max_len {max_len}"

    # pe stays f32; the add is done in f32 inside the kernel (PyTorch parity).
    pe_sliced = pe[:, :S, :].astype(jnp.float32)       # (1, S, D)

    # Lane-dense layout: collapse (S, D) so the minor dim is wide (unmasked vst).
    L = S * D
    x2 = x.reshape(B, L)                               # (B, S*D) — row-major bitcast
    pe2 = pe_sliced.reshape(1, L)                      # (1, S*D)

    itemsize = jnp.dtype(x.dtype).itemsize
    block_b, block_l, n_row, n_lane = _choose_tiles(B, L, itemsize)

    # Lane axis OUTER, row axis INNER: pe's block index is constant across
    # consecutive grid steps, so its tile is not re-fetched every step.
    grid = (n_lane, n_row)

    cost = pl.CostEstimate(
        flops=B * L,                                   # one add per element
        transcendentals=0,
        bytes_accessed=2 * B * L * itemsize + L * 4,   # read x + write out + read pe(f32)
    )

    # Double-buffered x + out tiles (+ tiny pe tile); 32 MiB covers the ~4 MiB
    # tiles used here and is safe on v5e/v6e (128 MiB physical) and v7x (64 MiB).
    x_tile_bytes = block_b * block_l * itemsize
    pe_tile_bytes = block_l * 4
    vmem_limit = int(min(64 << 20, max(32 << 20, 4 * (2 * x_tile_bytes + pe_tile_bytes))))

    extra_kwargs = {}
    if donate_x:
        # Safe only when x is dead after this op (halves HBM footprint).
        # TODO(synk): caller should also donate x at its jit boundary so XLA
        #             does not insert a defensive copy.
        extra_kwargs["input_output_aliases"] = {0: 0}

    out2 = pl.pallas_call(
        _pe_add_kernel,
        out_shape=jax.ShapeDtypeStruct((B, L), x.dtype),
        grid_spec=pltpu.PrefetchScalarGridSpec(
            num_scalar_prefetch=0,
            grid=grid,
            in_specs=[
                pl.BlockSpec((block_b, block_l), lambda j, i: (i, j)),   # x tile
                pl.BlockSpec((1, block_l), lambda j, i: (0, j)),         # pe tile (row bcast)
            ],
            out_specs=pl.BlockSpec((block_b, block_l), lambda j, i: (i, j)),
        ),
        compiler_params=pltpu.CompilerParams(
            # Pure elementwise: both axes independent → shard across v7x's 2 TCs.
            dimension_semantics=("parallel", "parallel"),
            vmem_limit_bytes=vmem_limit,
        ),
        cost_estimate=cost,
        **extra_kwargs,
    )(x2, pe2)

    return out2.reshape(B, S, D)


if __name__ == "__main__":
    # Small shapes consistent with the module's forward: (batch, seq, d_model).
    B, S, d_model = 2, 8, 32
    max_len = 64  # small, still >= S

    key = jax.random.PRNGKey(0)
    x = jax.random.normal(key, (B, S, d_model), dtype=jnp.float32)
    pe = _build_pe_table(d_model, max_len)

    out = positional_encoding_forward(x, pe)
    out = jax.block_until_ready(out)

    ref = x + pe[:, :S, :]
    assert out.shape == (B, S, d_model)
    assert jnp.allclose(out, ref, atol=1e-6), "mismatch vs reference"

    # Second check on awkward (non-aligned) shapes to exercise general tiling.
    B2, S2, d2 = 3, 7, 48
    x2 = jax.random.normal(jax.random.PRNGKey(0), (B2, S2, d2), dtype=jnp.float32)
    pe2 = _build_pe_table(d2, 16)
    out2 = jax.block_until_ready(positional_encoding_forward(x2, pe2))
    ref2 = x2 + pe2[:, :S2, :]
    assert jnp.allclose(out2, ref2, atol=1e-6), "mismatch vs reference (odd shapes)"

    print("KERNEL_OK")
</pallas_src>

<mosaic_0001>
module attributes {stable_mosaic.version = 11 : i64} {
  func.func @_pe_add_kernel(%arg0: i32, %arg1: i32, %arg2: memref<2x256xf32, #tpu.memory_space<vmem>>, %arg3: memref<1x256xf32, #tpu.memory_space<vmem>>, %arg4: memref<2x256xf32, #tpu.memory_space<vmem>>) attributes {dimension_semantics = [#tpu.dimension_semantics<parallel>, #tpu.dimension_semantics<parallel>], iteration_bounds = array<i64: 1, 1>, scalar_prefetch = 0 : i64, scratch_operands = 0 : i64, tpu.core_type = #tpu.core_type<tc>, window_params = [{transform_indices = @transform_0, window_bounds = array<i64: 2, 256>}, {transform_indices = @transform_1, window_bounds = array<i64: 1, 256>}, {transform_indices = @transform_2, window_bounds = array<i64: 2, 256>}]} {
    %c0 = arith.constant 0 : index
    %c0_0 = arith.constant 0 : index
    %0 = vector.load %arg2[%c0, %c0_0] : memref<2x256xf32, #tpu.memory_space<vmem>>, vector<2x256xf32>
    %c0_1 = arith.constant 0 : index
    %c0_2 = arith.constant 0 : index
    %1 = vector.load %arg3[%c0_1, %c0_2] : memref<1x256xf32, #tpu.memory_space<vmem>>, vector<1x256xf32>
    %2 = vector.broadcast %1 : vector<1x256xf32> to vector<2x256xf32>
    %3 = arith.addf %0, %2 : vector<2x256xf32>
    %c0_3 = arith.constant 0 : index
    %c0_4 = arith.constant 0 : index
    %4 = vector.load %arg4[%c0_3, %c0_4] : memref<2x256xf32, #tpu.memory_space<vmem>>, vector<2x256xf32>
    tpu.vector_store %arg4[%c0_3, %c0_4], %3 {strides = array<i32>} : memref<2x256xf32, #tpu.memory_space<vmem>>, vector<2x256xf32>,
    return
  }
  func.func @transform_0(%arg0: i32, %arg1: i32) -> (i32, i32) {
    %c0_i32 = arith.constant 0 : i32
    return %arg1, %arg0 : i32, i32
  }
  func.func @transform_1(%arg0: i32, %arg1: i32) -> (i32, i32) {
    %c0_i32 = arith.constant 0 : i32
    %c0_i32_0 = arith.constant 0 : i32
    return %c0_i32, %arg0 : i32, i32
  }
  func.func @transform_2(%arg0: i32, %arg1: i32) -> (i32, i32) {
    %c0_i32 = arith.constant 0 : i32
    return %arg1, %arg0 : i32, i32
  }
}

</mosaic_0001>

<llo_original>
// kernel: tpu_custom_call.1
$region0: #{tpu_custom_call.1}
  #allocation0 [shape = 'u32[]', space=smem, size = 0x4, offset = 0x4, fixed_abs, tag = 'smem constant byte address 0x4 - core index']
  #allocation1 [shape = 'u32[72,128]{1,0:T(1,128)}', space=vmem, size = 0x9000, scoped, tag = 'internal scratch']
  %s0 = inlined_call_operand.hbm [shape: f32[2,256], index: 0, kind: input, shape index: {}]
  %s1 = inlined_call_operand.hbm [shape: f32[1,256], index: 1, kind: input, shape index: {}]
  %s2 = inlined_call_operand.hbm [shape: f32[2,256], index: 2, kind: output, shape index: {}]
  %s3 = sld [smem:[#allocation0]]
  $region26: #{tpu_custom_call.1} parent=0
    _
  %s5 = ssub.s32 1, %s3
  %s6 = scalar_select 0, %s5, %s3
  $region1: #{tpu_custom_call.1} parent=0
    #allocation2 [shape = 'u8[2048]{0}', space=vmem, size = 0x800, scoped, tag = 'input window, operand 0, single buffered']
    #allocation3 [shape = 's32[1]{0}', space=sflag, size = 0x4, scoped, tag = 'scoped memory for tpu_custom_call.1']
    #allocation4 [shape = 's32[1]{0}', space=sflag, size = 0x4, scoped, tag = 'scoped memory for tpu_custom_call.1']
    #allocation5 [shape = 'u8[1024]{0}', space=vmem, size = 0x400, scoped, tag = 'input window, operand 1, single buffered']
    #allocation6 [shape = 's32[1]{0}', space=sflag, size = 0x4, scoped, tag = 'scoped memory for tpu_custom_call.1']
    #allocation7 [shape = 'u8[2048]{0}', space=vmem, size = 0x800, scoped, tag = 'output window, operand 0, single buffered']
    %7 = vsyncpa [#allocation3], 0
    %8 = vsyncpa [#allocation6], 0
    %9 = vsyncpa [#allocation4], 0
    // Predicated region
    $region2: #{tpu_custom_call.1} parent=1 // pred_check
      _
    $region3: #{tpu_custom_call.1} parent=1 // pred_check_branch
      %11 = sbr.rel (0) target = $region5
    $region4: #{tpu_custom_call.1} parent=1 // pred_region
      %13 = vsyncadd [#allocation3], 0
      %s15 = sshll.u32 %s0, 4
      %s16 = int_to_ptr.hbm [resolvable:$true] %s15
      %s17 = sshll.u32 [#allocation2], 4
      %s18 = int_to_ptr.vmem [resolvable:$true] %s17
      %20 = dma.hbm_to_vmem [thread:$0]  %s16, 64, %s18, [#allocation3]
    $region5: #{tpu_custom_call.1} parent=1 // pred_fallthru
      _
    // Predicated region
    $region6: #{tpu_custom_call.1} parent=1 // pred_check
      _
    $region7: #{tpu_custom_call.1} parent=1 // pred_check_branch
      %22 = sbr.rel (0) target = $region9
    $region8: #{tpu_custom_call.1} parent=1 // pred_region
      %24 = vsyncadd [#allocation6], 0
      %s26 = sshll.u32 %s1, 4
      %s27 = int_to_ptr.hbm [resolvable:$true] %s26
      %s28 = sshll.u32 [#allocation5], 4
      %s29 = int_to_ptr.vmem [resolvable:$true] %s28
      %31 = dma.hbm_to_vmem [thread:$0]  %s27, 32, %s29, [#allocation6]
    $region9: #{tpu_custom_call.1} parent=1 // pred_fallthru
      _
    // Predicated region
    $region10: #{tpu_custom_call.1} parent=1 // pred_check
      _
    $region11: #{tpu_custom_call.1} parent=1 // pred_check_branch
      %33 = sbr.rel (0) target = $region13
    $region12: #{tpu_custom_call.1} parent=1 // pred_region
      %35 = dma.done [#allocation3], 64
    $region13: #{tpu_custom_call.1} parent=1 // pred_fallthru
      _
    // Predicated region
    $region14: #{tpu_custom_call.1} parent=1 // pred_check
      _
    $region15: #{tpu_custom_call.1} parent=1 // pred_check_branch
      %37 = sbr.rel (0) target = $region17
    $region16: #{tpu_custom_call.1} parent=1 // pred_region
      %39 = dma.done [#allocation6], 32
    $region17: #{tpu_custom_call.1} parent=1 // pred_fallthru
      _
    %v40 = vld [vmem:[#allocation2] sm:$0xf]
    %v41 = vld [vmem:[#allocation5] sm:$0x3]
    %v43 = vperm.slane %v41, 0
    %v44 = vperm.slane %v41, 1
    %v45 = vrot.slane %v44, 6
    %vm46 = vcmask 1041408
    %v47 = vsel %vm46, %v43, %v45
    %v49 = vadd.f32 %v40, %v47
    %50 = vst [vmem:[#allocation7] sm:$0xf] %v49
    // Predicated region
    $region18: #{tpu_custom_call.1} parent=1 // pred_check
      _
    $region19: #{tpu_custom_call.1} parent=1 // pred_check_branch
      %52 = sbr.rel (0) target = $region21
    $region20: #{tpu_custom_call.1} parent=1 // pred_region
      %54 = vsyncadd [#allocation4], 0
      %s56 = sshll.u32 [#allocation7], 4
      %s57 = int_to_ptr.vmem [resolvable:$true] %s56
      %s58 = sshll.u32 %s2, 4
      %s59 = int_to_ptr.hbm [resolvable:$true] %s58
      %61 = dma.vmem_to_hbm [thread:$0]  %s57, 64, %s59, [#allocation4]
    $region21: #{tpu_custom_call.1} parent=1 // pred_fallthru
      _
    // Predicated region
    $region22: #{tpu_custom_call.1} parent=1 // pred_check
      _
    $region23: #{tpu_custom_call.1} parent=1 // pred_check_branch
      %63 = sbr.rel (0) target = $region25
    $region24: #{tpu_custom_call.1} parent=1 // pred_region
      %65 = dma.done [#allocation4], 64
    $region25: #{tpu_custom_call.1} parent=1 // pred_fallthru
      _
    %66 = vsyncpa [#allocation3], 1
    %67 = vsyncpa [#allocation6], 1
    %68 = vsyncpa [#allocation4], 1

</llo_original>
